<compile_context>
chip_gen: v6e
topology: v6e:2x2x1
jax: 0.10.0
libtpu: 0.0.40
codegen_flags: <defaults>
</compile_context>

<pallas_src>
import functools

import jax
import jax.numpy as jnp
from jax.experimental import pallas as pl
from jax.experimental.pallas import tpu as pltpu


# ------------------------------- kernel ------------------------------------

def costmlp_kernel(x_ref, w0_ref, b0_ref, wh_ref, bh_ref, wot_ref, bo_ref,
                   o_ref, *, n_hidden):
    # Layer 0: Linear(fp_dim, latent) -> ReLU   (Dropout = identity, inference)
    # x and w0 arrive as bf16; accumulate in f32 on the MXU.
    h = jnp.dot(x_ref[...], w0_ref[...],
                preferred_element_type=jnp.float32) + b0_ref[...]
    h = jnp.maximum(h, 0.0)

    # Hidden layers: statically unrolled; stacked bf16 weights stay in VMEM.
    for i in range(n_hidden):
        h = jnp.dot(h.astype(jnp.bfloat16), wh_ref[i],
                    preferred_element_type=jnp.float32) + bh_ref[i]
        h = jnp.maximum(h, 0.0)

    # Output layer Linear(latent, 1): VPU multiply + lane reduce (XLU), then
    # stable softplus log(1 + exp(z)) in f32.
    z = jnp.sum(h * wot_ref[...], axis=-1, keepdims=True) + bo_ref[...]
    o_ref[...] = jnp.maximum(z, 0.0) + jnp.log1p(jnp.exp(-jnp.abs(z)))


# ------------------------------- wrapper ------------------------------------

def costmlp_forward(params, fps, *, n_layers, block_b=128):
    B, FP = fps.shape
    LAT = params["w0"].shape[1]
    n_hidden = n_layers - 1
    nh_s = params["wh"].shape[0]          # stacked size (>= 1, dummy if n_hidden == 0)

    # Row tile: multiple of 8 sublanes; never bigger than needed.
    block_b = max(8, min(block_b, ((B + 7) // 8) * 8))
    Bp = ((B + block_b - 1) // block_b) * block_b
    if Bp != B:
        fps = jnp.pad(fps, ((0, Bp - B), (0, 0)))

    # Halve the dominant HBM traffic: bf16 fingerprints (0/1 -> exact) and
    # bf16 matmul weights.  Biases stay f32.
    fps_bf16 = fps.astype(jnp.bfloat16)
    w0_bf16 = params["w0"].astype(jnp.bfloat16)
    wh_bf16 = params["wh"].astype(jnp.bfloat16)

    out = pl.pallas_call(
        functools.partial(costmlp_kernel, n_hidden=n_hidden),
        out_shape=jax.ShapeDtypeStruct((Bp, 1), jnp.float32),
        grid=(Bp // block_b,),
        in_specs=[
            pl.BlockSpec((block_b, FP), lambda i: (i, 0)),        # fps row tile (bf16)
            pl.BlockSpec((FP, LAT), lambda i: (0, 0)),            # w0 (bf16)
            pl.BlockSpec((1, LAT), lambda i: (0, 0)),             # b0 (f32)
            pl.BlockSpec((nh_s, LAT, LAT), lambda i: (0, 0, 0)),  # stacked hidden W (bf16)
            pl.BlockSpec((nh_s, 1, LAT), lambda i: (0, 0, 0)),    # stacked hidden b (f32)
            pl.BlockSpec((1, LAT), lambda i: (0, 0)),             # wo^T (1, latent) f32
            pl.BlockSpec((1, 1), lambda i: (0, 0)),               # bo (f32)
        ],
        out_specs=pl.BlockSpec((block_b, 1), lambda i: (i, 0)),
        compiler_params=pltpu.CompilerParams(
            dimension_semantics=("parallel",)),                   # megacore on v7x
    )(fps_bf16, w0_bf16, params["b0"], wh_bf16, params["bh"],
      params["wo_t"], params["bo"])

    return out[:B]


# --------------------------- params / reference -----------------------------

def init_params(key, n_layers, fp_dim, latent_dim):
    """Matches torch nn.Linear default init (U(-1/sqrt(fan_in), 1/sqrt(fan_in)))."""
    keys = jax.random.split(key, n_layers + 2)

    def lin(k, fan_in, fan_out):
        bound = 1.0 / float(fan_in) ** 0.5
        kw, kb = jax.random.split(k)
        w = jax.random.uniform(kw, (fan_in, fan_out), jnp.float32, -bound, bound)
        b = jax.random.uniform(kb, (1, fan_out), jnp.float32, -bound, bound)
        return w, b

    w0, b0 = lin(keys[0], fp_dim, latent_dim)
    n_hidden = n_layers - 1
    whs, bhs = [], []
    for i in range(max(n_hidden, 1)):        # keep >=1 slot so BlockSpecs stay valid
        w, b = lin(keys[1 + i], latent_dim, latent_dim)
        whs.append(w)
        bhs.append(b)
    wo, bo = lin(keys[n_layers + 1], latent_dim, 1)
    return {
        "w0": w0, "b0": b0,
        "wh": jnp.stack(whs), "bh": jnp.stack(bhs),
        "wo_t": wo.T,                        # (1, latent): lane-dense, no in-kernel transpose
        "bo": bo,                            # (1, 1)
    }


def costmlp_ref(params, fps, n_layers):
    """Pure-JAX reference with the same bf16-matmul / f32-accumulate math."""
    h = jnp.dot(fps.astype(jnp.bfloat16), params["w0"].astype(jnp.bfloat16),
                preferred_element_type=jnp.float32) + params["b0"]
    h = jnp.maximum(h, 0.0)
    for i in range(n_layers - 1):
        h = jnp.dot(h.astype(jnp.bfloat16), params["wh"][i].astype(jnp.bfloat16),
                    preferred_element_type=jnp.float32) + params["bh"][i]
        h = jnp.maximum(h, 0.0)
    z = jnp.sum(h * params["wo_t"], axis=-1, keepdims=True) + params["bo"]
    return jnp.maximum(z, 0.0) + jnp.log1p(jnp.exp(-jnp.abs(z)))


# ---------------------------------- main -------------------------------------

if __name__ == "__main__":
    N_LAYERS = 3          # Linear(fp,lat) + 2 x Linear(lat,lat) + Linear(lat,1)
    FP_DIM = 512          # Morgan fingerprint bits (small for the demo)
    LATENT = 128          # lane-dense hidden width
    DROPOUT = 0.1         # inference: identity
    B = 40                # batch of fingerprints
    BLOCK_B = 16          # small row tile so the demo exercises a multi-step grid

    key = jax.random.PRNGKey(0)
    kp, kf = jax.random.split(key)
    params = init_params(kp, N_LAYERS, FP_DIM, LATENT)
    # binary fingerprint inputs (exact in bf16)
    fps = jax.random.bernoulli(kf, 0.1, (B, FP_DIM)).astype(jnp.float32)

    out = costmlp_forward(params, fps, n_layers=N_LAYERS, block_b=BLOCK_B)
    out = jax.block_until_ready(out)

    ref = costmlp_ref(params, fps, N_LAYERS)
    assert out.shape == (B, 1)
    assert bool(jnp.all(jnp.isfinite(out)))
    assert bool(jnp.allclose(out, ref, rtol=1e-3, atol=1e-3))
    print("KERNEL_OK")

    # TODO(synk): smiles_to_fp (RDKit Morgan fingerprinting) is host-side
    # featurization with no TPU-kernel equivalent; inputs here are synthetic bits.
</pallas_src>

<mosaic_0001>
module attributes {stable_mosaic.version = 11 : i64} {
  func.func @costmlp_kernel(%arg0: i32, %arg1: memref<16x512xbf16, #tpu.memory_space<vmem>>, %arg2: memref<512x128xbf16, #tpu.memory_space<vmem>>, %arg3: memref<1x128xf32, #tpu.memory_space<vmem>>, %arg4: memref<2x128x128xbf16, #tpu.memory_space<vmem>>, %arg5: memref<2x1x128xf32, #tpu.memory_space<vmem>>, %arg6: memref<1x128xf32, #tpu.memory_space<vmem>>, %arg7: memref<1x1xf32, #tpu.memory_space<vmem>>, %arg8: memref<16x1xf32, #tpu.memory_space<vmem>>) attributes {dimension_semantics = [#tpu.dimension_semantics<parallel>], iteration_bounds = array<i64: 3>, scalar_prefetch = 0 : i64, scratch_operands = 0 : i64, tpu.core_type = #tpu.core_type<tc>, window_params = [{transform_indices = @transform_0, window_bounds = array<i64: 16, 512>}, {pipeline_mode = #tpu.pipeline_mode<synchronous>, transform_indices = @transform_1, window_bounds = array<i64: 512, 128>}, {pipeline_mode = #tpu.pipeline_mode<synchronous>, transform_indices = @transform_2, window_bounds = array<i64: 1, 128>}, {pipeline_mode = #tpu.pipeline_mode<synchronous>, transform_indices = @transform_3, window_bounds = array<i64: 2, 128, 128>}, {pipeline_mode = #tpu.pipeline_mode<synchronous>, transform_indices = @transform_4, window_bounds = array<i64: 2, 1, 128>}, {pipeline_mode = #tpu.pipeline_mode<synchronous>, transform_indices = @transform_5, window_bounds = array<i64: 1, 128>}, {pipeline_mode = #tpu.pipeline_mode<synchronous>, transform_indices = @transform_6, window_bounds = array<i64: 1, 1>}, {transform_indices = @transform_7, window_bounds = array<i64: 16, 1>}]} {
    %c0 = arith.constant 0 : index
    %c0_0 = arith.constant 0 : index
    %0 = vector.load %arg1[%c0, %c0_0] : memref<16x512xbf16, #tpu.memory_space<vmem>>, vector<16x512xbf16>
    %c0_1 = arith.constant 0 : index
    %c0_2 = arith.constant 0 : index
    %1 = vector.load %arg2[%c0_1, %c0_2] : memref<512x128xbf16, #tpu.memory_space<vmem>>, vector<512x128xbf16>
    %cst = arith.constant dense<0.000000e+00> : vector<16x128xf32>
    %2 = tpu.matmul %0, %1, %cst {dimension_numbers = #tpu.dot_dimension_numbers<[1], [0], [0], [1], [0, 0, 1, 1], [], []>} : vector<16x512xbf16>, vector<512x128xbf16>, vector<16x128xf32> -> vector<16x128xf32>
    %c0_3 = arith.constant 0 : index
    %c0_4 = arith.constant 0 : index
    %3 = vector.load %arg3[%c0_3, %c0_4] : memref<1x128xf32, #tpu.memory_space<vmem>>, vector<1x128xf32>
    %4 = vector.broadcast %3 : vector<1x128xf32> to vector<16x128xf32>
    %5 = arith.addf %2, %4 : vector<16x128xf32>
    %cst_5 = arith.constant 0.000000e+00 : f32
    %6 = vector.broadcast %cst_5 : f32 to vector<16x128xf32>
    %7 = arith.maximumf %5, %6 : vector<16x128xf32>
    %8 = arith.truncf %7 : vector<16x128xf32> to vector<16x128xbf16>
    %c0_6 = arith.constant 0 : index
    %c0_7 = arith.constant 0 : index
    %c0_8 = arith.constant 0 : index
    %9 = vector.load %arg4[%c0_6, %c0_7, %c0_8] : memref<2x128x128xbf16, #tpu.memory_space<vmem>>, vector<1x128x128xbf16>
    %10 = vector.shape_cast %9 : vector<1x128x128xbf16> to vector<128x128xbf16>
    %cst_9 = arith.constant dense<0.000000e+00> : vector<16x128xf32>
    %11 = tpu.matmul %8, %10, %cst_9 {dimension_numbers = #tpu.dot_dimension_numbers<[1], [0], [0], [1], [0, 0, 1, 1], [], []>} : vector<16x128xbf16>, vector<128x128xbf16>, vector<16x128xf32> -> vector<16x128xf32>
    %c0_10 = arith.constant 0 : index
    %c0_11 = arith.constant 0 : index
    %c0_12 = arith.constant 0 : index
    %12 = vector.load %arg5[%c0_10, %c0_11, %c0_12] : memref<2x1x128xf32, #tpu.memory_space<vmem>>, vector<1x1x128xf32>
    %13 = vector.shape_cast %12 : vector<1x1x128xf32> to vector<1x128xf32>
    %14 = vector.broadcast %13 : vector<1x128xf32> to vector<16x128xf32>
    %15 = arith.addf %11, %14 : vector<16x128xf32>
    %cst_13 = arith.constant 0.000000e+00 : f32
    %16 = vector.broadcast %cst_13 : f32 to vector<16x128xf32>
    %17 = arith.maximumf %15, %16 : vector<16x128xf32>
    %18 = arith.truncf %17 : vector<16x128xf32> to vector<16x128xbf16>
    %c1 = arith.constant 1 : index
    %c0_14 = arith.constant 0 : index
    %c0_15 = arith.constant 0 : index
    %19 = vector.load %arg4[%c1, %c0_14, %c0_15] : memref<2x128x128xbf16, #tpu.memory_space<vmem>>, vector<1x128x128xbf16>
    %20 = vector.shape_cast %19 : vector<1x128x128xbf16> to vector<128x128xbf16>
    %cst_16 = arith.constant dense<0.000000e+00> : vector<16x128xf32>
    %21 = tpu.matmul %18, %20, %cst_16 {dimension_numbers = #tpu.dot_dimension_numbers<[1], [0], [0], [1], [0, 0, 1, 1], [], []>} : vector<16x128xbf16>, vector<128x128xbf16>, vector<16x128xf32> -> vector<16x128xf32>
    %c1_17 = arith.constant 1 : index
    %c0_18 = arith.constant 0 : index
    %c0_19 = arith.constant 0 : index
    %22 = vector.load %arg5[%c1_17, %c0_18, %c0_19] : memref<2x1x128xf32, #tpu.memory_space<vmem>>, vector<1x1x128xf32>
    %23 = vector.shape_cast %22 : vector<1x1x128xf32> to vector<1x128xf32>
    %24 = vector.broadcast %23 : vector<1x128xf32> to vector<16x128xf32>
    %25 = arith.addf %21, %24 : vector<16x128xf32>
    %cst_20 = arith.constant 0.000000e+00 : f32
    %26 = vector.broadcast %cst_20 : f32 to vector<16x128xf32>
    %27 = arith.maximumf %25, %26 : vector<16x128xf32>
    %c0_21 = arith.constant 0 : index
    %c0_22 = arith.constant 0 : index
    %28 = vector.load %arg6[%c0_21, %c0_22] : memref<1x128xf32, #tpu.memory_space<vmem>>, vector<1x128xf32>
    %29 = vector.broadcast %28 : vector<1x128xf32> to vector<16x128xf32>
    %30 = arith.mulf %27, %29 : vector<16x128xf32>
    %cst_23 = arith.constant dense<0.000000e+00> : vector<16xf32>
    %31 = vector.multi_reduction <add>, %30, %cst_23 [1] : vector<16x128xf32> to vector<16xf32>
    %32 = vector.shape_cast %31 : vector<16xf32> to vector<16x1xf32>
    %c0_24 = arith.constant 0 : index
    %c0_25 = arith.constant 0 : index
    %33 = vector.load %arg7[%c0_24, %c0_25] : memref<1x1xf32, #tpu.memory_space<vmem>>, vector<1x1xf32>
    %34 = vector.broadcast %33 : vector<1x1xf32> to vector<16x1xf32>
    %35 = arith.addf %32, %34 : vector<16x1xf32>
    %cst_26 = arith.constant 0.000000e+00 : f32
    %36 = vector.broadcast %cst_26 : f32 to vector<16x1xf32>
    %37 = arith.maximumf %35, %36 : vector<16x1xf32>
    %38 = math.absf %35 : vector<16x1xf32>
    %cst_27 = arith.constant 0.000000e+00 : f32
    %39 = vector.broadcast %cst_27 : f32 to vector<16x1xf32>
    %40 = arith.subf %39, %38 : vector<16x1xf32>
    %41 = math.exp %40 : vector<16x1xf32>
    %42 = math.log1p %41 : vector<16x1xf32>
    %43 = arith.addf %37, %42 : vector<16x1xf32>
    %c0_28 = arith.constant 0 : index
    %c0_29 = arith.constant 0 : index
    %44 = vector.load %arg8[%c0_28, %c0_29] : memref<16x1xf32, #tpu.memory_space<vmem>>, vector<16x1xf32>
    tpu.vector_store %arg8[%c0_28, %c0_29], %43 {strides = array<i32>} : memref<16x1xf32, #tpu.memory_space<vmem>>, vector<16x1xf32>,
    return
  }
  func.func @transform_0(%arg0: i32) -> (i32, i32) {
    %c0_i32 = arith.constant 0 : i32
    %c0_i32_0 = arith.constant 0 : i32
    return %arg0, %c0_i32 : i32, i32
  }
  func.func @transform_1(%arg0: i32) -> (i32, i32) {
    %c0_i32 = arith.constant 0 : i32
    %c0_i32_0 = arith.constant 0 : i32
    %c0_i32_1 = arith.constant 0 : i32
    return %c0_i32, %c0_i32_0 : i32, i32
  }
  func.func @transform_2(%arg0: i32) -> (i32, i32) {
    %c0_i32 = arith.constant 0 : i32
    %c0_i32_0 = arith.constant 0 : i32
    %c0_i32_1 = arith.constant 0 : i32
    return %c0_i32, %c0_i32_0 : i32, i32
  }
  func.func @transform_3(%arg0: i32) -> (i32, i32, i32) {
    %c0_i32 = arith.constant 0 : i32
    %c0_i32_0 = arith.constant 0 : i32
    %c0_i32_1 = arith.constant 0 : i32
    %c0_i32_2 = arith.constant 0 : i32
    return %c0_i32, %c0_i32_0, %c0_i32_1 : i32, i32, i32
  }
  func.func @transform_4(%arg0: i32) -> (i32, i32, i32) {
    %c0_i32 = arith.constant 0 : i32
    %c0_i32_0 = arith.constant 0 : i32
    %c0_i32_1 = arith.constant 0 : i32
    %c0_i32_2 = arith.constant 0 : i32
    return %c0_i32, %c0_i32_0, %c0_i32_1 : i32, i32, i32
  }
  func.func @transform_5(%arg0: i32) -> (i32, i32) {
    %c0_i32 = arith.constant 0 : i32
    %c0_i32_0 = arith.constant 0 : i32
    %c0_i32_1 = arith.constant 0 : i32
    return %c0_i32, %c0_i32_0 : i32, i32
  }
  func.func @transform_6(%arg0: i32) -> (i32, i32) {
    %c0_i32 = arith.constant 0 : i32
    %c0_i32_0 = arith.constant 0 : i32
    %c0_i32_1 = arith.constant 0 : i32
    return %c0_i32, %c0_i32_0 : i32, i32
  }
  func.func @transform_7(%arg0: i32) -> (i32, i32) {
    %c0_i32 = arith.constant 0 : i32
    %c0_i32_0 = arith.constant 0 : i32
    return %arg0, %c0_i32 : i32, i32
  }
}

</mosaic_0001>

<llo_original>
// kernel: tpu_custom_call.1
$region0: #{tpu_custom_call.1}
  #allocation0 [shape = 'u32[]', space=smem, size = 0x4, offset = 0x4, fixed_abs, tag = 'smem constant byte address 0x4 - core index']
  #allocation1 [shape = 'u32[144,128]{1,0:T(1,128)}', space=vmem, size = 0x12000, scoped, tag = 'internal scratch']
  #allocation2 [shape = 'f32[1,1]{1,0:T(1,128)S(1)}', space=vmem, size = 0x200, scoped, tag = 'scoped memory for tpu_custom_call.1']
  %s0 = inlined_call_operand.hbm [shape: bf16[48,512], index: 0, kind: input, shape index: {}]
  %s1 = inlined_call_operand.hbm [shape: bf16[512,128], index: 1, kind: input, shape index: {}]
  %s2 = inlined_call_operand.vmem [shape: f32[1,128], index: 2, kind: input, shape index: {}]
  %s3 = inlined_call_operand.hbm [shape: bf16[2,128,128], index: 3, kind: input, shape index: {}]
  %s4 = inlined_call_operand.vmem [shape: f32[2,1,128], index: 4, kind: input, shape index: {}]
  %s5 = inlined_call_operand.vmem [shape: f32[1,128], index: 5, kind: input, shape index: {}]
  %s6 = inlined_call_operand.<no memory space> [shape: f32[1,1], index: 6, kind: input, shape index: {}]
  %s7 = inlined_call_operand.vmem [shape: f32[48,1], index: 7, kind: output, shape index: {}]
  %s8 = sld [smem:[#allocation0]]
  $region73: #{tpu_custom_call.1} parent=0
    _
  %s10 = ssub.s32 1, %s8
  %s11 = scalar_select 0, %s10, %s8
  %v12 = vstv %s6
  %13 = vst [vmem:[#allocation2] sm:$0x1] %v12
  $region1: #{tpu_custom_call.1} parent=0
    #allocation3 [shape = 'u8[32768]{0}', space=vmem, size = 0x8000, scoped, tag = 'input window, operand 0']
    #allocation4 [shape = 's32[2]{0}', space=sflag, size = 0x8, scoped, tag = 'scoped memory for tpu_custom_call.1']
    #allocation5 [shape = 'u8[131072]{0}', space=vmem, size = 0x20000, scoped, tag = 'input window, operand 1, single buffered']
    #allocation6 [shape = 's32[1]{0}', space=sflag, size = 0x4, scoped, tag = 'scoped memory for tpu_custom_call.1']
    #allocation7 [shape = 'u8[65536]{0}', space=vmem, size = 0x10000, scoped, tag = 'input window, operand 3, single buffered']
    %14 = vsyncpa [#allocation4], 0
    %s15 = scalar_lea.sflag [#allocation4], 1
    %16 = vsyncpa %s15, 0
    %17 = vsyncpa [#allocation6], 0
    loop: start=0, step=1, limit=5
    $region2: #{tpu_custom_call.1} parent=1 // loop_pre_header
      _
    $region3: #{tpu_custom_call.1} parent=1 // loop_header
      %s19 = sphi 0, %s23
      %p20 = scmp.ge.s32.totalorder %s19, 5
      %s29 = sphi 0, %s31
      %s32 = sphi 0, %s29
      %s33 = sphi 0, %s32
      %s49 = sphi 0, %s33
      %s53 = sphi 0, %s53
      %s55 = sphi 0, %s53
      %s56 = sphi 0, %s55
      %s70 = sphi 0, %s56
      %s74 = sphi 0, %s74
      %s76 = sphi 0, %s74
      %s77 = sphi 0, %s76
      %s91 = sphi 0, %s77
      %s95 = sphi 0, %s95
      %s97 = sphi 0, %s95
      %s98 = sphi 0, %s97
      %s112 = sphi 0, %s98
      %s116 = sphi 0, %s116
      %s118 = sphi 0, %s116
      %s119 = sphi 0, %s118
      %s133 = sphi 0, %s119
      %s137 = sphi 0, %s137
      %s139 = sphi 0, %s137
      %s140 = sphi 0, %s139
      %s154 = sphi 0, %s140
      %s158 = sphi 0, %s158
      %s160 = sphi 0, %s158
      %s161 = sphi 0, %s160
      %s175 = sphi 0, %s161
      %s181 = sphi 0, %s183
      %s184 = sphi 0, %s181
      %s185 = sphi 0, %s184
      %s201 = sphi 0, %s185
    $region4: #{tpu_custom_call.1} parent=1 // loop_header_branch
      %22 = sbr.rel (%p20) target = $region8
    $region5: #{tpu_custom_call.1} parent=1 // loop_body
      %s24 = ssub.s32 %s19, 1
      %s25 = ssub.s32 %s19, 2
      %s26 = sadd.s32 %s19, 1
      %s27 = ssub.s32 %s19, %s26
      %p28 = scmp.eq.s32.totalorder %s27, 0
      %s30 = sadd.s32 %s29, 1
      %s31 = scalar_select %p28, %s29, %s30
      %p34 = pneg %p28
      %p35 = scmp.eq.s32.totalorder %s19, 2
      %p36 = por %p34, %p35
      %p37 = scmp.ne.s32.totalorder %s29, %s32
      %p38 = scmp.eq.s32.totalorder %s19, 0
      %p39 = por %p37, %p38
      %p40 = scmp.ne.s32.totalorder %s29, %s32
      %p41 = scmp.eq.s32.totalorder %s24, 2
      %p42 = por %p40, %p41
      %p43 = scmp.ne.s32.totalorder %s32, %s33
      %p44 = scmp.eq.s32.totalorder %s24, 0
      %p45 = por %p43, %p44
      %p46 = scmp.ne.s32.totalorder %s32, %s33
      %p47 = scmp.eq.s32.totalorder %s25, 2
      %p48 = por %p46, %p47
      %p50 = scmp.ne.s32.totalorder %s33, %s49
      %p51 = scmp.eq.s32.totalorder %s25, 0
      %p52 = por %p50, %p51
      %s54 = sadd.s32 %s53, 1
      %p57 = scmp.eq.s32.totalorder %s19, 2
      %p58 = scmp.ne.s32.totalorder %s53, %s55
      %p59 = scmp.eq.s32.totalorder %s19, 0
      %p60 = por %p58, %p59
      %p61 = scmp.ne.s32.totalorder %s53, %s55
      %p62 = scmp.eq.s32.totalorder %s24, 2
      %p63 = por %p61, %p62
      %p64 = scmp.ne.s32.totalorder %s55, %s56
      %p65 = scmp.eq.s32.totalorder %s24, 0
      %p66 = por %p64, %p65
      %p67 = scmp.ne.s32.totalorder %s55, %s56
      %p68 = scmp.eq.s32.totalorder %s25, 2
      %p69 = por %p67, %p68
      %p71 = scmp.ne.s32.totalorder %s56, %s70
      %p72 = scmp.eq.s32.totalorder %s25, 0
      %p73 = por %p71, %p72
      %s75 = sadd.s32 %s74, 1
      %p78 = scmp.eq.s32.totalorder %s19, 2
      %p79 = scmp.ne.s32.totalorder %s74, %s76
      %p80 = scmp.eq.s32.totalorder %s19, 0
      %p81 = por %p79, %p80
      %p82 = scmp.ne.s32.totalorder %s74, %s76
      %p83 = scmp.eq.s32.totalorder %s24, 2
      %p84 = por %p82, %p83
      %p85 = scmp.ne.s32.totalorder %s76, %s77
      %p86 = scmp.eq.s32.totalorder %s24, 0
      %p87 = por %p85, %p86
      %p88 = scmp.ne.s32.totalorder %s76, %s77
      %p89 = scmp.eq.s32.totalorder %s25, 2
      %p90 = por %p88, %p89
      %p92 = scmp.ne.s32.totalorder %s77, %s91
      %p93 = scmp.eq.s32.totalorder %s25, 0
      %p94 = por %p92, %p93
      %s96 = sadd.s32 %s95, 1
      %p99 = scmp.eq.s32.totalorder %s19, 2
      %p100 = scmp.ne.s32.totalorder %s95, %s97
      %p101 = scmp.eq.s32.totalorder %s19, 0
      %p102 = por %p100, %p101
      %p103 = scmp.ne.s32.totalorder %s95, %s97
      %p104 = scmp.eq.s32.totalorder %s24, 2
      %p105 = por %p103, %p104
      %p106 = scmp.ne.s32.totalorder %s97, %s98
      %p107 = scmp.eq.s32.totalorder %s24, 0
      %p108 = por %p106, %p107
      %p109 = scmp.ne.s32.totalorder %s97, %s98
      %p110 = scmp.eq.s32.totalorder %s25, 2
      %p111 = por %p109, %p110
      %p113 = scmp.ne.s32.totalorder %s98, %s112
      %p114 = scmp.eq.s32.totalorder %s25, 0
      %p115 = por %p113, %p114
      %s117 = sadd.s32 %s116, 1
      %p120 = scmp.eq.s32.totalorder %s19, 2
      %p121 = scmp.ne.s32.totalorder %s116, %s118
      %p122 = scmp.eq.s32.totalorder %s19, 0
      %p123 = por %p121, %p122
      %p124 = scmp.ne.s32.totalorder %s116, %s118
      %p125 = scmp.eq.s32.totalorder %s24, 2
      %p126 = por %p124, %p125
      %p127 = scmp.ne.s32.totalorder %s118, %s119
      %p128 = scmp.eq.s32.totalorder %s24, 0
      %p129 = por %p127, %p128
      %p130 = scmp.ne.s32.totalorder %s118, %s119
      %p131 = scmp.eq.s32.totalorder %s25, 2
      %p132 = por %p130, %p131
      %p134 = scmp.ne.s32.totalorder %s119, %s133
      %p135 = scmp.eq.s32.totalorder %s25, 0
      %p136 = por %p134, %p135
      %s138 = sadd.s32 %s137, 1
      %p141 = scmp.eq.s32.totalorder %s19, 2
      %p142 = scmp.ne.s32.totalorder %s137, %s139
      %p143 = scmp.eq.s32.totalorder %s19, 0
      %p144 = por %p142, %p143
      %p145 = scmp.ne.s32.totalorder %s137, %s139
      %p146 = scmp.eq.s32.totalorder %s24, 2
      %p147 = por %p145, %p146
      %p148 = scmp.ne.s32.totalorder %s139, %s140
      %p149 = scmp.eq.s32.totalorder %s24, 0
      %p150 = por %p148, %p149
      %p151 = scmp.ne.s32.totalorder %s139, %s140
      %p152 = scmp.eq.s32.totalorder %s25, 2
      %p153 = por %p151, %p152
      %p155 = scmp.ne.s32.totalorder %s140, %s154
      %p156 = scmp.eq.s32.totalorder %s25, 0
      %p157 = por %p155, %p156
      %s159 = sadd.s32 %s158, 1
      %p162 = scmp.eq.s32.totalorder %s19, 2
      %p163 = scmp.ne.s32.totalorder %s158, %s160
      %p164 = scmp.eq.s32.totalorder %s19, 0
      %p165 = por %p163, %p164
      %p166 = scmp.ne.s32.totalorder %s158, %s160
      %p167 = scmp.eq.s32.totalorder %s24, 2
      %p168 = por %p166, %p167
      %p169 = scmp.ne.s32.totalorder %s160, %s161
      %p170 = scmp.eq.s32.totalorder %s24, 0
      %p171 = por %p169, %p170
      %p172 = scmp.ne.s32.totalorder %s160, %s161
      %p173 = scmp.eq.s32.totalorder %s25, 2
      %p174 = por %p172, %p173
      %p176 = scmp.ne.s32.totalorder %s161, %s175
      %p177 = scmp.eq.s32.totalorder %s25, 0
      %p178 = por %p176, %p177
      %s179 = ssub.s32 %s19, %s26
      %p180 = scmp.eq.s32.totalorder %s179, 0
      %s182 = sadd.s32 %s181, 1
      %s183 = scalar_select %p180, %s181, %s182
      %p186 = pneg %p180
      %p187 = scmp.eq.s32.totalorder %s19, 2
      %p188 = por %p186, %p187
      %p189 = scmp.ne.s32.totalorder %s181, %s184
      %p190 = scmp.eq.s32.totalorder %s19, 0
      %p191 = por %p189, %p190
      %p192 = scmp.ne.s32.totalorder %s181, %s184
      %p193 = scmp.eq.s32.totalorder %s24, 2
      %p194 = por %p192, %p193
      %p195 = scmp.ne.s32.totalorder %s184, %s185
      %p196 = scmp.eq.s32.totalorder %s24, 0
      %p197 = por %p195, %p196
      %p198 = scmp.ne.s32.totalorder %s184, %s185
      %p199 = scmp.eq.s32.totalorder %s25, 2
      %p200 = por %p198, %p199
      %p202 = scmp.ne.s32.totalorder %s185, %s201
      %p203 = scmp.eq.s32.totalorder %s25, 0
      %p204 = por %p202, %p203
      %p205 = scmp.le.s32.totalorder 1, %s19
      %p206 = scmp.lt.s32.totalorder %s19, 4
      %p207 = pnand %p205, %p206
      %p208 = pneg %p207
      // Predicated region
      $region9: #{tpu_custom_call.1} parent=5 // pred_check
        _
      $region10: #{tpu_custom_call.1} parent=5 // pred_check_branch
        %210 = sbr.rel (%p207) target = $region12
      $region11: #{tpu_custom_call.1} parent=5 // pred_region
        %s211 = ssub.s32 %s19, 1
        // Predicated region
        $region13: #{tpu_custom_call.1} parent=11 // pred_check
          %p212 = pneg %p66
        $region14: #{tpu_custom_call.1} parent=11 // pred_check_branch
          %214 = sbr.rel (%p212) target = $region16
        $region15: #{tpu_custom_call.1} parent=11 // pred_region
          %s216 = ssub.s32 4096, 4096
          %217 = vsyncadd [#allocation6], %s216
          %s218 = sshll.u32 [#allocation5], 4
          %s219 = int_to_ptr.vmem [resolvable:$true] %s218
          %224 = dma.hbm_to_vmem [thread:$0]  %s1, 4096, %s219, [#allocation6], 64, 64, 4
        $region16: #{tpu_custom_call.1} parent=11 // pred_fallthru
          _
        // Predicated region
        $region17: #{tpu_custom_call.1} parent=11 // pred_check
          %p225 = pneg %p87
        $region18: #{tpu_custom_call.1} parent=11 // pred_check_branch
          %227 = sbr.rel (%p225) target = $region20
        $region19: #{tpu_custom_call.1} parent=11 // pred_region
          _
        $region20: #{tpu_custom_call.1} parent=11 // pred_fallthru
          _
        // Predicated region
        $region21: #{tpu_custom_call.1} parent=11 // pred_check
          %p228 = pneg %p108
        $region22: #{tpu_custom_call.1} parent=11 // pred_check_branch
          %230 = sbr.rel (%p228) target = $region24
        $region23: #{tpu_custom_call.1} parent=11 // pred_region
          %s232 = ssub.s32 2048, 2048
          %233 = vsyncadd [#allocation6], %s232
          %s234 = sshll.u32 [#allocation7], 4
          %s235 = int_to_ptr.vmem [resolvable:$true] %s234
          %240 = dma.hbm_to_vmem [thread:$0]  %s3, 2048, %s235, [#allocation6], 64, 64, 4
        $region24: #{tpu_custom_call.1} parent=11 // pred_fallthru
          _
        // Predicated region
        $region25: #{tpu_custom_call.1} parent=11 // pred_check
          %p241 = pneg %p129
        $region26: #{tpu_custom_call.1} parent=11 // pred_check_branch
          %243 = sbr.rel (%p241) target = $region28
        $region27: #{tpu_custom_call.1} parent=11 // pred_region
          _
        $region28: #{tpu_custom_call.1} parent=11 // pred_fallthru
          _
        // Predicated region
        $region29: #{tpu_custom_call.1} parent=11 // pred_check
          %p244 = pneg %p150
        $region30: #{tpu_custom_call.1} parent=11 // pred_check_branch
          %246 = sbr.rel (%p244) target = $region32
        $region31: #{tpu_custom_call.1} parent=11 // pred_region
          _
        $region32: #{tpu_custom_call.1} parent=11 // pred_fallthru
          _
        // Predicated region
        $region33: #{tpu_custom_call.1} parent=11 // pred_check
          %p247 = pneg %p171
        $region34: #{tpu_custom_call.1} parent=11 // pred_check_branch
          %249 = sbr.rel (%p247) target = $region36
        $region35: #{tpu_custom_call.1} parent=11 // pred_region
          _
        $region36: #{tpu_custom_call.1} parent=11 // pred_fallthru
          _
      $region12: #{tpu_custom_call.1} parent=5 // pred_fallthru
        _
      %p250 = scmp.lt.s32.totalorder %s19, 3
      // Predicated region
      $region37: #{tpu_custom_call.1} parent=5 // pred_check
        %p251 = pneg %p250
      $region38: #{tpu_custom_call.1} parent=5 // pred_check_branch
        %253 = sbr.rel (%p251) target = $region40
      $region39: #{tpu_custom_call.1} parent=5 // pred_region
        // Predicated region
        $region41: #{tpu_custom_call.1} parent=39 // pred_check
          %p254 = pneg %p39
        $region42: #{tpu_custom_call.1} parent=39 // pred_check_branch
          %256 = sbr.rel (%p254) target = $region44
        $region43: #{tpu_custom_call.1} parent=39 // pred_region
          %s257 = sand.u32 %s29, 1
          %s258 = scalar_lea.sflag [#allocation4], %s257
          %s259 = sand.u32 %s29, 1
          %s260 = smul.addr %s259, 32
          %s261 = scalar_lea.vmem [#allocation3], %s260
          %s262 = smul.u32 2, %s19
          %s264 = ssub.s32 512, 512
          %265 = vsyncadd %s258, %s264
          %s266 = smul.addr %s262, 4
          %s267 = smul.addr %s266, 64
          %s268 = scalar_lea.hbm %s0, %s267
          %s269 = sshll.u32 %s261, 4
          %s270 = int_to_ptr.vmem [resolvable:$true] %s269
          %275 = dma.hbm_to_vmem [thread:$0]  %s268, 512, %s270, %s258, 256, 256, 16
        $region44: #{tpu_custom_call.1} parent=39 // pred_fallthru
          _
      $region40: #{tpu_custom_call.1} parent=5 // pred_fallthru
        _
      %p276 = scmp.le.s32.totalorder 1, %s19
      %p277 = scmp.lt.s32.totalorder %s19, 4
      %p278 = pnand %p276, %p277
      %p279 = pneg %p278
      // Predicated region
      $region45: #{tpu_custom_call.1} parent=5 // pred_check
        _
      $region46: #{tpu_custom_call.1} parent=5 // pred_check_branch
        %281 = sbr.rel (%p278) target = $region48
      $region47: #{tpu_custom_call.1} parent=5 // pred_region
        %s282 = ssub.s32 %s19, 1
        %s283 = sand.u32 %s32, 1
        %s284 = scalar_lea.sflag [#allocation4], %s283
        %s285 = sand.u32 %s32, 1
        %s286 = smul.addr %s285, 32
        %s287 = scalar_lea.vmem [#allocation3], %s286
        // Predicated region
        $region49: #{tpu_custom_call.1} parent=47 // pred_check
          %p288 = pneg %p45
        $region50: #{tpu_custom_call.1} parent=47 // pred_check_branch
          %290 = sbr.rel (%p288) target = $region52
        $region51: #{tpu_custom_call.1} parent=47 // pred_region
          %291 = dma.done %s284, 512
        $region52: #{tpu_custom_call.1} parent=47 // pred_fallthru
          _
        // Predicated region
        $region53: #{tpu_custom_call.1} parent=47 // pred_check
          %p292 = pneg %p66
        $region54: #{tpu_custom_call.1} parent=47 // pred_check_branch
          %294 = sbr.rel (%p292) target = $region56
        $region55: #{tpu_custom_call.1} parent=47 // pred_region
          %295 = dma.done [#allocation6], 4096
        $region56: #{tpu_custom_call.1} parent=47 // pred_fallthru
          _
        // Predicated region
        $region57: #{tpu_custom_call.1} parent=47 // pred_check
          %p296 = pneg %p108
        $region58: #{tpu_custom_call.1} parent=47 // pred_check_branch
          %298 = sbr.rel (%p296) target = $region60
        $region59: #{tpu_custom_call.1} parent=47 // pred_region
          %299 = dma.done [#allocation6], 2048
        $region60: #{tpu_custom_call.1} parent=47 // pred_fallthru
          _
        %s300 = sand.u32 %s32, 1
        %s301 = scalar_lea.sflag [#allocation4], %s300
        %s302 = sand.u32 %s32, 1
        %s303 = smul.addr %s302, 32
        %s304 = scalar_lea.vmem [#allocation3], %s303
        %p305 = pneg %p45
        %p306 = pneg %p42
        %p307 = pneg %p66
        %p308 = pneg %p63
        %p309 = pneg %p87
        %p310 = pneg %p84
        %p311 = pneg %p108
        %p312 = pneg %p105
        %p313 = pneg %p129
        %p314 = pneg %p126
        %p315 = pneg %p150
        %p316 = pneg %p147
        %p317 = pneg %p171
        %p318 = pneg %p168
        %p319 = pneg %p197
        %p320 = pneg %p194
        %s321 = smul.u32 2, %s24
        %p322 = scmp.lt.s32.totalorder %s321, 5
        %s323 = scalar_select %p322, %s321, 5
        %s324 = smul.addr %s323, 8
        %s325 = scalar_lea.vmem %s7, %s324
        %s326 = smul.u32 2, %s24
        %s327 = smul.u32 2, %s24
        %p328 = scmp.lt.s32.totalorder %s327, 5
        %s329 = scalar_select %p328, %s327, 5
        %s330 = smul.addr %s329, 8
        %s331 = scalar_lea.vmem %s7, %s330
        %s332 = smul.u32 2, %s24
        %v334 = vld [vmem:[%s287] sm:$0xff]
        %v335 = vld [vmem:[%s287 + $0x8] sm:$0xff]
        %v336 = vld [vmem:[%s287 + $0x10] sm:$0xff]
        %v337 = vld [vmem:[%s287 + $0x18] sm:$0xff]
        %v338 = vld [vmem:[#allocation5] sm:$0xf]
        %v339 = vld [vmem:[#allocation5 + $0x4] sm:$0xf]
        %v340 = vld [vmem:[#allocation5 + $0x8] sm:$0xf]
        %v341 = vld [vmem:[#allocation5 + $0xc] sm:$0xf]
        %v342 = vld [vmem:[#allocation5 + $0x10] sm:$0xf]
        %v343 = vld [vmem:[#allocation5 + $0x14] sm:$0xf]
        %v344 = vld [vmem:[#allocation5 + $0x18] sm:$0xf]
        %v345 = vld [vmem:[#allocation5 + $0x1c] sm:$0xf]
        %v346 = vld [vmem:[#allocation5 + $0x20] sm:$0xf]
        %v347 = vld [vmem:[#allocation5 + $0x24] sm:$0xf]
        %v348 = vld [vmem:[#allocation5 + $0x28] sm:$0xf]
        %v349 = vld [vmem:[#allocation5 + $0x2c] sm:$0xf]
        %v350 = vld [vmem:[#allocation5 + $0x30] sm:$0xf]
        %v351 = vld [vmem:[#allocation5 + $0x34] sm:$0xf]
        %v352 = vld [vmem:[#allocation5 + $0x38] sm:$0xf]
        %v353 = vld [vmem:[#allocation5 + $0x3c] sm:$0xf]
        %v354 = vld [vmem:[#allocation5 + $0x40] sm:$0xf]
        %v355 = vld [vmem:[#allocation5 + $0x44] sm:$0xf]
        %v356 = vld [vmem:[#allocation5 + $0x48] sm:$0xf]
        %v357 = vld [vmem:[#allocation5 + $0x4c] sm:$0xf]
        %v358 = vld [vmem:[#allocation5 + $0x50] sm:$0xf]
        %v359 = vld [vmem:[#allocation5 + $0x54] sm:$0xf]
        %v360 = vld [vmem:[#allocation5 + $0x58] sm:$0xf]
        %v361 = vld [vmem:[#allocation5 + $0x5c] sm:$0xf]
        %v362 = vld [vmem:[#allocation5 + $0x60] sm:$0xf]
        %v363 = vld [vmem:[#allocation5 + $0x64] sm:$0xf]
        %v364 = vld [vmem:[#allocation5 + $0x68] sm:$0xf]
        %v365 = vld [vmem:[#allocation5 + $0x6c] sm:$0xf]
        %v366 = vld [vmem:[#allocation5 + $0x70] sm:$0xf]
        %v367 = vld [vmem:[#allocation5 + $0x74] sm:$0xf]
        %v368 = vld [vmem:[#allocation5 + $0x78] sm:$0xf]
        %v369 = vld [vmem:[#allocation5 + $0x7c] sm:$0xf]
        %v370 = vld [vmem:[#allocation5 + $0x80] sm:$0xf]
        %v371 = vld [vmem:[#allocation5 + $0x84] sm:$0xf]
        %v372 = vld [vmem:[#allocation5 + $0x88] sm:$0xf]
        %v373 = vld [vmem:[#allocation5 + $0x8c] sm:$0xf]
        %v374 = vld [vmem:[#allocation5 + $0x90] sm:$0xf]
        %v375 = vld [vmem:[#allocation5 + $0x94] sm:$0xf]
        %v376 = vld [vmem:[#allocation5 + $0x98] sm:$0xf]
        %v377 = vld [vmem:[#allocation5 + $0x9c] sm:$0xf]
        %v378 = vld [vmem:[#allocation5 + $0xa0] sm:$0xf]
        %v379 = vld [vmem:[#allocation5 + $0xa4] sm:$0xf]
        %v380 = vld [vmem:[#allocation5 + $0xa8] sm:$0xf]
        %v381 = vld [vmem:[#allocation5 + $0xac] sm:$0xf]
        %v382 = vld [vmem:[#allocation5 + $0xb0] sm:$0xf]
        %v383 = vld [vmem:[#allocation5 + $0xb4] sm:$0xf]
        %v384 = vld [vmem:[#allocation5 + $0xb8] sm:$0xf]
        %v385 = vld [vmem:[#allocation5 + $0xbc] sm:$0xf]
        %v386 = vld [vmem:[#allocation5 + $0xc0] sm:$0xf]
        %v387 = vld [vmem:[#allocation5 + $0xc4] sm:$0xf]
        %v388 = vld [vmem:[#allocation5 + $0xc8] sm:$0xf]
        %v389 = vld [vmem:[#allocation5 + $0xcc] sm:$0xf]
        %v390 = vld [vmem:[#allocation5 + $0xd0] sm:$0xf]
        %v391 = vld [vmem:[#allocation5 + $0xd4] sm:$0xf]
        %v392 = vld [vmem:[#allocation5 + $0xd8] sm:$0xf]
        %v393 = vld [vmem:[#allocation5 + $0xdc] sm:$0xf]
        %v394 = vld [vmem:[#allocation5 + $0xe0] sm:$0xf]
        %v395 = vld [vmem:[#allocation5 + $0xe4] sm:$0xf]
        %v396 = vld [vmem:[#allocation5 + $0xe8] sm:$0xf]
        %v397 = vld [vmem:[#allocation5 + $0xec] sm:$0xf]
        %v398 = vld [vmem:[#allocation5 + $0xf0] sm:$0xf]
        %v399 = vld [vmem:[#allocation5 + $0xf4] sm:$0xf]
        %v400 = vld [vmem:[#allocation5 + $0xf8] sm:$0xf]
        %v401 = vld [vmem:[#allocation5 + $0xfc] sm:$0xf]
        %v402 = vld [vmem:[%s2] sm:$0x1]
        %v404 = vlaneseq
        %v405 = vshrl.u32 %v404, 7
        %v406 = vsub.s32 0, %v405
        %v407 = vrot.slane %v402, %v406
        %v413 = vunpack.c.l.b16 %v334
        %v414 = vunpack.c.h.b16 %v334
        %v415 = vunpack.c.l.b16 %v335
        %v416 = vunpack.c.h.b16 %v335
        %v417 = vunpack.c.l.b16 %v336
        %v418 = vunpack.c.h.b16 %v336
        %v419 = vunpack.c.l.b16 %v337
        %v420 = vunpack.c.h.b16 %v337
        %v421 = vpack.c.b16 %v417, %v413
        %v422 = vpack.c.b16 %v418, %v414
        %v423 = vpack.c.b16 %v419, %v415
        %v424 = vpack.c.b16 %v420, %v416
        %v493 = vunpack.c.l.b16 %v338
        %v494 = vunpack.c.l.b16 %v339
        %v495 = vunpack.c.l.b16 %v340
        %v496 = vunpack.c.l.b16 %v341
        %v497 = vunpack.c.l.b16 %v342
        %v498 = vunpack.c.l.b16 %v343
        %v499 = vunpack.c.l.b16 %v344
        %v500 = vunpack.c.l.b16 %v345
        %v501 = vunpack.c.l.b16 %v346
        %v502 = vunpack.c.l.b16 %v347
        %v503 = vunpack.c.l.b16 %v348
        %v504 = vunpack.c.l.b16 %v349
        %v505 = vunpack.c.l.b16 %v350
        %v506 = vunpack.c.l.b16 %v351
        %v507 = vunpack.c.l.b16 %v352
        %v508 = vunpack.c.l.b16 %v353
        %v509 = vunpack.c.l.b16 %v354
        %v510 = vunpack.c.l.b16 %v355
        %v511 = vunpack.c.l.b16 %v356
        %v512 = vunpack.c.l.b16 %v357
        %v513 = vunpack.c.l.b16 %v358
        %v514 = vunpack.c.l.b16 %v359
        %v515 = vunpack.c.l.b16 %v360
        %v516 = vunpack.c.l.b16 %v361
        %v517 = vunpack.c.l.b16 %v362
        %v518 = vunpack.c.l.b16 %v363
        %v519 = vunpack.c.l.b16 %v364
        %v520 = vunpack.c.l.b16 %v365
        %v521 = vunpack.c.l.b16 %v366
        %v522 = vunpack.c.l.b16 %v367
        %v523 = vunpack.c.l.b16 %v368
        %v524 = vunpack.c.l.b16 %v369
        %v525 = vunpack.c.l.b16 %v370
        %v526 = vunpack.c.l.b16 %v371
        %v527 = vunpack.c.l.b16 %v372
        %v528 = vunpack.c.l.b16 %v373
        %v529 = vunpack.c.l.b16 %v374
        %v530 = vunpack.c.l.b16 %v375
        %v531 = vunpack.c.l.b16 %v376
        %v532 = vunpack.c.l.b16 %v377
        %v533 = vunpack.c.l.b16 %v378
        %v534 = vunpack.c.l.b16 %v379
        %v535 = vunpack.c.l.b16 %v380
        %v536 = vunpack.c.l.b16 %v381
        %v537 = vunpack.c.l.b16 %v382
        %v538 = vunpack.c.l.b16 %v383
        %v539 = vunpack.c.l.b16 %v384
        %v540 = vunpack.c.l.b16 %v385
        %v541 = vunpack.c.l.b16 %v386
        %v542 = vunpack.c.l.b16 %v387
        %v543 = vunpack.c.l.b16 %v388
        %v544 = vunpack.c.l.b16 %v389
        %v545 = vunpack.c.l.b16 %v390
        %v546 = vunpack.c.l.b16 %v391
        %v547 = vunpack.c.l.b16 %v392
        %v548 = vunpack.c.l.b16 %v393
        %v549 = vunpack.c.l.b16 %v394
        %v550 = vunpack.c.l.b16 %v395
        %v551 = vunpack.c.l.b16 %v396
        %v552 = vunpack.c.l.b16 %v397
        %v553 = vunpack.c.l.b16 %v398
        %v554 = vunpack.c.l.b16 %v399
        %v555 = vunpack.c.l.b16 %v400
        %v556 = vunpack.c.l.b16 %v401
        %v557 = vpack.c.b16 %v494, %v493
        %v558 = vpack.c.b16 %v496, %v495
        %v559 = vpack.c.b16 %v498, %v497
        %v560 = vpack.c.b16 %v500, %v499
        %v561 = vpack.c.b16 %v502, %v501
        %v562 = vpack.c.b16 %v504, %v503
        %v563 = vpack.c.b16 %v506, %v505
        %v564 = vpack.c.b16 %v508, %v507
        %v565 = vpack.c.b16 %v510, %v509
        %v566 = vpack.c.b16 %v512, %v511
        %v567 = vpack.c.b16 %v514, %v513
        %v568 = vpack.c.b16 %v516, %v515
        %v569 = vpack.c.b16 %v518, %v517
        %v570 = vpack.c.b16 %v520, %v519
        %v571 = vpack.c.b16 %v522, %v521
        %v572 = vpack.c.b16 %v524, %v523
        %v573 = vpack.c.b16 %v526, %v525
        %v574 = vpack.c.b16 %v528, %v527
        %v575 = vpack.c.b16 %v530, %v529
        %v576 = vpack.c.b16 %v532, %v531
        %v577 = vpack.c.b16 %v534, %v533
        %v578 = vpack.c.b16 %v536, %v535
        %v579 = vpack.c.b16 %v538, %v537
        %v580 = vpack.c.b16 %v540, %v539
        %v581 = vpack.c.b16 %v542, %v541
        %v582 = vpack.c.b16 %v544, %v543
        %v583 = vpack.c.b16 %v546, %v545
        %v584 = vpack.c.b16 %v548, %v547
        %v585 = vpack.c.b16 %v550, %v549
        %v586 = vpack.c.b16 %v552, %v551
        %v587 = vpack.c.b16 %v554, %v553
        %v588 = vpack.c.b16 %v556, %v555
        %621 = vmatprep.subr.bf16.mxu0 0
        %622 = vmatpush1.bf16.msra.mxu0 %v564
        %623 = vmatprep.subr.bf16.mxu0 0
        %624 = vmatpush1.bf16.msra.mxu0 %v563
        %625 = vmatprep.subr.bf16.mxu0 0
        %626 = vmatpush1.bf16.msra.mxu0 %v562
        %627 = vmatprep.subr.bf16.mxu0 0
        %628 = vmatpush1.bf16.msra.mxu0 %v561
        %629 = vmatprep.subr.bf16.mxu0 0
        %630 = vmatpush1.bf16.msra.mxu0 %v560
        %631 = vmatprep.subr.bf16.mxu0 0
        %632 = vmatpush1.bf16.msra.mxu0 %v559
        %633 = vmatprep.subr.bf16.mxu0 0
        %634 = vmatpush1.bf16.msra.mxu0 %v558
        %635 = vmatprep.subr.bf16.mxu0 0
        %636 = vmatpush1.bf16.msra.mxu0 %v557
        %637 = vmatprep.subr.bf16.mxu0 0
        %638 = vmatpush2.bf16.msra.mxu0 %v572
        %639 = vmatprep.subr.bf16.mxu0 0
        %640 = vmatpush2.bf16.msra.mxu0 %v571
        %641 = vmatprep.subr.bf16.mxu0 0
        %642 = vmatpush2.bf16.msra.mxu0 %v570
        %643 = vmatprep.subr.bf16.mxu0 0
        %644 = vmatpush2.bf16.msra.mxu0 %v569
        %645 = vmatprep.subr.bf16.mxu0 0
        %646 = vmatpush2.bf16.msra.mxu0 %v568
        %647 = vmatprep.subr.bf16.mxu0 0
        %648 = vmatpush2.bf16.msra.mxu0 %v567
        %649 = vmatprep.subr.bf16.mxu0 0
        %650 = vmatpush2.bf16.msra.mxu0 %v566
        %651 = vmatprep.subr.bf16.mxu0 0
        %652 = vmatpush2.bf16.msra.mxu0 %v565
        %653 = vmatprep.mubr.bf16.mxu0 %v422
        %654 = vmatmul.mubr.bf16.gmra.mxu0 %v421
        %v655 = vpop.f32.mrf.mxu0
        %v656 = vadd.f32 %v407, %v655
        %v657 = vpop.f32.mrf.mxu0
        %v658 = vpop.f32.mrf.mxu0
        %v659 = vadd.f32 %v407, %v658
        %v660 = vpop.f32.mrf.mxu0
        %661 = vdwg.mxu0
        %662 = vmatprep.subr.bf16.mxu0 0
        %663 = vmatpush1.bf16.msra.mxu0 %v580
        %664 = vmatprep.subr.bf16.mxu0 0
        %665 = vmatpush1.bf16.msra.mxu0 %v579
        %666 = vmatprep.subr.bf16.mxu0 0
        %667 = vmatpush1.bf16.msra.mxu0 %v578
        %668 = vmatprep.subr.bf16.mxu0 0
        %669 = vmatpush1.bf16.msra.mxu0 %v577
        %670 = vmatprep.subr.bf16.mxu0 0
        %671 = vmatpush1.bf16.msra.mxu0 %v576
        %672 = vmatprep.subr.bf16.mxu0 0
        %673 = vmatpush1.bf16.msra.mxu0 %v575
        %674 = vmatprep.subr.bf16.mxu0 0
        %675 = vmatpush1.bf16.msra.mxu0 %v574
        %676 = vmatprep.subr.bf16.mxu0 0
        %677 = vmatpush1.bf16.msra.mxu0 %v573
        %678 = vmatprep.subr.bf16.mxu0 0
        %679 = vmatpush2.bf16.msra.mxu0 %v588
        %680 = vmatprep.subr.bf16.mxu0 0
        %681 = vmatpush2.bf16.msra.mxu0 %v587
        %682 = vmatprep.subr.bf16.mxu0 0
        %683 = vmatpush2.bf16.msra.mxu0 %v586
        %684 = vmatprep.subr.bf16.mxu0 0
        %685 = vmatpush2.bf16.msra.mxu0 %v585
        %686 = vmatprep.subr.bf16.mxu0 0
        %687 = vmatpush2.bf16.msra.mxu0 %v584
        %688 = vmatprep.subr.bf16.mxu0 0
        %689 = vmatpush2.bf16.msra.mxu0 %v583
        %690 = vmatprep.subr.bf16.mxu0 0
        %691 = vmatpush2.bf16.msra.mxu0 %v582
        %692 = vmatprep.subr.bf16.mxu0 0
        %693 = vmatpush2.bf16.msra.mxu0 %v581
        %694 = vmatprep.mubr.bf16.mxu0 %v424
        %695 = vmatmul.mubr.bf16.gmra.mxu0 %v423
        %v696 = vpop.f32.mrf.mxu0
        %v697 = vadd.f32 %v656, %v696
        %v698 = vpop.f32.mrf.mxu0
        %v699 = vpop.f32.mrf.mxu0
        %v700 = vadd.f32 %v659, %v699
        %v701 = vpop.f32.mrf.mxu0
        %702 = vdwg.mxu0
        %v703 = vmax.f32 %v697, 0.0
        %v704 = vmax.f32 %v700, 0.0
        %v705 = vpack.c.bf16 %v704, %v703
        %v706 = vld [vmem:[#allocation7] sm:$0xf]
        %v707 = vld [vmem:[#allocation7 + $0x4] sm:$0xf]
        %v708 = vld [vmem:[#allocation7 + $0x8] sm:$0xf]
        %v709 = vld [vmem:[#allocation7 + $0xc] sm:$0xf]
        %v710 = vld [vmem:[#allocation7 + $0x10] sm:$0xf]
        %v711 = vld [vmem:[#allocation7 + $0x14] sm:$0xf]
        %v712 = vld [vmem:[#allocation7 + $0x18] sm:$0xf]
        %v713 = vld [vmem:[#allocation7 + $0x1c] sm:$0xf]
        %v714 = vld [vmem:[#allocation7 + $0x20] sm:$0xf]
        %v715 = vld [vmem:[#allocation7 + $0x24] sm:$0xf]
        %v716 = vld [vmem:[#allocation7 + $0x28] sm:$0xf]
        %v717 = vld [vmem:[#allocation7 + $0x2c] sm:$0xf]
        %v718 = vld [vmem:[#allocation7 + $0x30] sm:$0xf]
        %v719 = vld [vmem:[#allocation7 + $0x34] sm:$0xf]
        %v720 = vld [vmem:[#allocation7 + $0x38] sm:$0xf]
        %v721 = vld [vmem:[#allocation7 + $0x3c] sm:$0xf]
        %v722 = vld [vmem:[%s4] sm:$0x1]
        %v724 = vlaneseq
        %v725 = vshrl.u32 %v724, 7
        %v726 = vsub.s32 0, %v725
        %v727 = vrot.slane %v722, %v726
        %v745 = vunpack.c.l.b16 %v706
        %v746 = vunpack.c.l.b16 %v707
        %v747 = vunpack.c.l.b16 %v708
        %v748 = vunpack.c.l.b16 %v709
        %v749 = vunpack.c.l.b16 %v710
        %v750 = vunpack.c.l.b16 %v711
        %v751 = vunpack.c.l.b16 %v712
        %v752 = vunpack.c.l.b16 %v713
        %v753 = vunpack.c.l.b16 %v714
        %v754 = vunpack.c.l.b16 %v715
        %v755 = vunpack.c.l.b16 %v716
        %v756 = vunpack.c.l.b16 %v717
        %v757 = vunpack.c.l.b16 %v718
        %v758 = vunpack.c.l.b16 %v719
        %v759 = vunpack.c.l.b16 %v720
        %v760 = vunpack.c.l.b16 %v721
        %v761 = vpack.c.b16 %v746, %v745
        %v762 = vpack.c.b16 %v748, %v747
        %v763 = vpack.c.b16 %v750, %v749
        %v764 = vpack.c.b16 %v752, %v751
        %v765 = vpack.c.b16 %v754, %v753
        %v766 = vpack.c.b16 %v756, %v755
        %v767 = vpack.c.b16 %v758, %v757
        %v768 = vpack.c.b16 %v760, %v759
        %777 = vmatprep.subr.bf16.mxu0 0
        %778 = vmatpush1.bf16.msra.mxu0 %v768
        %779 = vmatprep.subr.bf16.mxu0 0
        %780 = vmatpush1.bf16.msra.mxu0 %v767
        %781 = vmatprep.subr.bf16.mxu0 0
        %782 = vmatpush1.bf16.msra.mxu0 %v766
        %783 = vmatprep.subr.bf16.mxu0 0
        %784 = vmatpush1.bf16.msra.mxu0 %v765
        %785 = vmatprep.subr.bf16.mxu0 0
        %786 = vmatpush1.bf16.msra.mxu0 %v764
        %787 = vmatprep.subr.bf16.mxu0 0
        %788 = vmatpush1.bf16.msra.mxu0 %v763
        %789 = vmatprep.subr.bf16.mxu0 0
        %790 = vmatpush1.bf16.msra.mxu0 %v762
        %791 = vmatprep.subr.bf16.mxu0 0
        %792 = vmatpush1.bf16.msra.mxu0 %v761
        %793 = vmatprep.subr.bf16.mxu0 0
        %794 = vmatpush2.bf16.msra.mxu0 0
        %795 = vmatprep.subr.bf16.mxu0 0
        %796 = vmatpush2.bf16.msra.mxu0 0
        %797 = vmatprep.subr.bf16.mxu0 0
        %798 = vmatpush2.bf16.msra.mxu0 0
        %799 = vmatprep.subr.bf16.mxu0 0
        %800 = vmatpush2.bf16.msra.mxu0 0
        %801 = vmatprep.subr.bf16.mxu0 0
        %802 = vmatpush2.bf16.msra.mxu0 0
        %803 = vmatprep.subr.bf16.mxu0 0
        %804 = vmatpush2.bf16.msra.mxu0 0
        %805 = vmatprep.subr.bf16.mxu0 0
        %806 = vmatpush2.bf16.msra.mxu0 0
        %807 = vmatprep.subr.bf16.mxu0 0
        %808 = vmatpush2.bf16.msra.mxu0 0
        %809 = vmatprep.mubr.bf16.mxu0 0
        %810 = vmatmul.mubr.bf16.gmra.mxu0 %v705
        %v811 = vpop.f32.mrf.mxu0
        %v812 = vadd.f32 %v727, %v811
        %v813 = vpop.f32.mrf.mxu0
        %v814 = vpop.f32.mrf.mxu0
        %v815 = vadd.f32 %v727, %v814
        %v816 = vpop.f32.mrf.mxu0
        %817 = vdwg.mxu0
        %v818 = vmax.f32 %v812, 0.0
        %v819 = vmax.f32 %v815, 0.0
        %v820 = vpack.c.bf16 %v819, %v818
        %s821 = scalar_lea.vmem [#allocation7], 64
        %v822 = vld [vmem:[%s821] sm:$0xf]
        %v823 = vld [vmem:[%s821 + $0x4] sm:$0xf]
        %v824 = vld [vmem:[%s821 + $0x8] sm:$0xf]
        %v825 = vld [vmem:[%s821 + $0xc] sm:$0xf]
        %v826 = vld [vmem:[%s821 + $0x10] sm:$0xf]
        %v827 = vld [vmem:[%s821 + $0x14] sm:$0xf]
        %v828 = vld [vmem:[%s821 + $0x18] sm:$0xf]
        %v829 = vld [vmem:[%s821 + $0x1c] sm:$0xf]
        %v830 = vld [vmem:[%s821 + $0x20] sm:$0xf]
        %v831 = vld [vmem:[%s821 + $0x24] sm:$0xf]
        %v832 = vld [vmem:[%s821 + $0x28] sm:$0xf]
        %v833 = vld [vmem:[%s821 + $0x2c] sm:$0xf]
        %v834 = vld [vmem:[%s821 + $0x30] sm:$0xf]
        %v835 = vld [vmem:[%s821 + $0x34] sm:$0xf]
        %v836 = vld [vmem:[%s821 + $0x38] sm:$0xf]
        %v837 = vld [vmem:[%s821 + $0x3c] sm:$0xf]
        %s838 = scalar_lea.vmem %s4, 1
        %v839 = vld [vmem:[%s838] sm:$0x1]
        %v841 = vlaneseq
        %v842 = vshrl.u32 %v841, 7
        %v843 = vsub.s32 0, %v842
        %v844 = vrot.slane %v839, %v843
        %v862 = vunpack.c.l.b16 %v822
        %v863 = vunpack.c.l.b16 %v823
        %v864 = vunpack.c.l.b16 %v824
        %v865 = vunpack.c.l.b16 %v825
        %v866 = vunpack.c.l.b16 %v826
        %v867 = vunpack.c.l.b16 %v827
        %v868 = vunpack.c.l.b16 %v828
        %v869 = vunpack.c.l.b16 %v829
        %v870 = vunpack.c.l.b16 %v830
        %v871 = vunpack.c.l.b16 %v831
        %v872 = vunpack.c.l.b16 %v832
        %v873 = vunpack.c.l.b16 %v833
        %v874 = vunpack.c.l.b16 %v834
        %v875 = vunpack.c.l.b16 %v835
        %v876 = vunpack.c.l.b16 %v836
        %v877 = vunpack.c.l.b16 %v837
        %v878 = vpack.c.b16 %v863, %v862
        %v879 = vpack.c.b16 %v865, %v864
        %v880 = vpack.c.b16 %v867, %v866
        %v881 = vpack.c.b16 %v869, %v868
        %v882 = vpack.c.b16 %v871, %v870
        %v883 = vpack.c.b16 %v873, %v872
        %v884 = vpack.c.b16 %v875, %v874
        %v885 = vpack.c.b16 %v877, %v876
        %894 = vmatprep.subr.bf16.mxu0 0
        %895 = vmatpush1.bf16.msra.mxu0 %v885
        %896 = vmatprep.subr.bf16.mxu0 0
        %897 = vmatpush1.bf16.msra.mxu0 %v884
        %898 = vmatprep.subr.bf16.mxu0 0
        %899 = vmatpush1.bf16.msra.mxu0 %v883
        %900 = vmatprep.subr.bf16.mxu0 0
        %901 = vmatpush1.bf16.msra.mxu0 %v882
        %902 = vmatprep.subr.bf16.mxu0 0
        %903 = vmatpush1.bf16.msra.mxu0 %v881
        %904 = vmatprep.subr.bf16.mxu0 0
        %905 = vmatpush1.bf16.msra.mxu0 %v880
        %906 = vmatprep.subr.bf16.mxu0 0
        %907 = vmatpush1.bf16.msra.mxu0 %v879
        %908 = vmatprep.subr.bf16.mxu0 0
        %909 = vmatpush1.bf16.msra.mxu0 %v878
        %910 = vmatprep.subr.bf16.mxu0 0
        %911 = vmatpush2.bf16.msra.mxu0 0
        %912 = vmatprep.subr.bf16.mxu0 0
        %913 = vmatpush2.bf16.msra.mxu0 0
        %914 = vmatprep.subr.bf16.mxu0 0
        %915 = vmatpush2.bf16.msra.mxu0 0
        %916 = vmatprep.subr.bf16.mxu0 0
        %917 = vmatpush2.bf16.msra.mxu0 0
        %918 = vmatprep.subr.bf16.mxu0 0
        %919 = vmatpush2.bf16.msra.mxu0 0
        %920 = vmatprep.subr.bf16.mxu0 0
        %921 = vmatpush2.bf16.msra.mxu0 0
        %922 = vmatprep.subr.bf16.mxu0 0
        %923 = vmatpush2.bf16.msra.mxu0 0
        %924 = vmatprep.subr.bf16.mxu0 0
        %925 = vmatpush2.bf16.msra.mxu0 0
        %926 = vmatprep.mubr.bf16.mxu0 0
        %927 = vmatmul.mubr.bf16.gmra.mxu0 %v820
        %v928 = vpop.f32.mrf.mxu0
        %v929 = vadd.f32 %v844, %v928
        %v930 = vpop.f32.mrf.mxu0
        %v931 = vpop.f32.mrf.mxu0
        %v932 = vadd.f32 %v844, %v931
        %v933 = vpop.f32.mrf.mxu0
        %934 = vdwg.mxu0
        %v935 = vmax.f32 %v929, 0.0
        %v936 = vmax.f32 %v932, 0.0
        %v937 = vld [vmem:[%s5] sm:$0x1]
        %v939 = vlaneseq
        %v940 = vshrl.u32 %v939, 7
        %v941 = vsub.s32 0, %v940
        %v942 = vrot.slane %v937, %v941
        %v944 = vmul.f32 %v935, %v942
        %v945 = vmul.f32 %v936, %v942
        %946 = vadd.xlane.f32.xlu0 %v944
        %v947 = vpop.xlane.xlu0 %946
        %948 = vadd.xlane.f32.xlu0 %v945
        %v949 = vpop.xlane.xlu0 %948
        %v950 = vld [vmem:[#allocation2] sm:$0x1]
        %v952 = vlaneseq
        %v953 = vshrl.u32 %v952, 7
        %v954 = vsub.s32 0, %v953
        %v955 = vrot.slane %v950, %v954
        %v957 = vadd.f32 %v947, %v955
        %v958 = vadd.f32 %v949, %v955
        %v959 = vmax.f32 %v957, 0.0
        %v960 = vmax.f32 %v958, 0.0
        %v961 = vand.u32 2147483647, %v957
        %v962 = vand.u32 2147483647, %v958
        %v963 = vsub.f32 0.0, %v961
        %v964 = vsub.f32 0.0, %v962
        %v965 = vmul.f32 %v963, 1.442695
        %v966 = vpow.pop %v965
        %v967 = vmul.f32 %v964, 1.442695
        %v968 = vpow.pop %v967
        %v969 = vadd.f32 %v966, 1.0
        %v970 = vlog2.pop %v969
        %v971 = vmul.f32 %v970, 0.6931472
        %v972 = vmul.f32 -0.5, %v966
        %v973 = vadd.f32 %v972, 1.0
        %v974 = vmul.f32 %v973, %v966
        %v975 = vand.u32 2147483647, %v966
        %vm976 = vcmp.lt.f32.partialorder %v975, 0.0004427343
        %v977 = vsel %vm976, %v974, %v971
        %v978 = vadd.f32 %v968, 1.0
        %v979 = vlog2.pop %v978
        %v980 = vmul.f32 %v979, 0.6931472
        %v981 = vmul.f32 -0.5, %v968
        %v982 = vadd.f32 %v981, 1.0
        %v983 = vmul.f32 %v982, %v968
        %v984 = vand.u32 2147483647, %v968
        %vm985 = vcmp.lt.f32.partialorder %v984, 0.0004427343
        %v986 = vsel %vm985, %v983, %v980
        %v987 = vadd.f32 %v959, %v977
        %v988 = vadd.f32 %v960, %v986
        %vm989 = vcmask 7168
        %990 = vst.msk [vmem:[%s331] sm:$0xff] %vm989, %v987
        %991 = vst.msk [vmem:[%s331 + $0x8] sm:$0xff] %vm989, %v988
        %s992 = smul.u32 2, %s24
        %p993 = scmp.lt.s32.totalorder %s992, 5
        %s994 = scalar_select %p993, %s992, 5
        %s995 = smul.addr %s994, 8
        %s996 = scalar_lea.vmem %s7, %s995
        // Predicated region
        $region61: #{tpu_custom_call.1} parent=47 // pred_check
          %p997 = pneg %p194
        $region62: #{tpu_custom_call.1} parent=47 // pred_check_branch
          %999 = sbr.rel (%p997) target = $region64
        $region63: #{tpu_custom_call.1} parent=47 // pred_region
          %s1000 = smul.u32 2, %s24
        $region64: #{tpu_custom_call.1} parent=47 // pred_fallthru
          _
      $region48: #{tpu_custom_call.1} parent=5 // pred_fallthru
        _
      %p1001 = scmp.le.s32.totalorder 2, %s19
      // Predicated region
      $region65: #{tpu_custom_call.1} parent=5 // pred_check
        %p1002 = pneg %p1001
      $region66: #{tpu_custom_call.1} parent=5 // pred_check_branch
        %1004 = sbr.rel (%p1002) target = $region68
      $region67: #{tpu_custom_call.1} parent=5 // pred_region
        %s1005 = ssub.s32 %s19, 2
        // Predicated region
        $region69: #{tpu_custom_call.1} parent=67 // pred_check
          %p1006 = pneg %p200
        $region70: #{tpu_custom_call.1} parent=67 // pred_check_branch
          %1008 = sbr.rel (%p1006) target = $region72
        $region71: #{tpu_custom_call.1} parent=67 // pred_region
          %s1009 = smul.u32 2, %s25
          %p1010 = scmp.lt.s32.totalorder %s1009, 5
          %s1011 = scalar_select %p1010, %s1009, 5
          %s1012 = smul.addr %s1011, 8
          %s1013 = scalar_lea.vmem %s7, %s1012
        $region72: #{tpu_custom_call.1} parent=67 // pred_fallthru
          _
      $region68: #{tpu_custom_call.1} parent=5 // pred_fallthru
        _
    $region6: #{tpu_custom_call.1} parent=1 // loop_footer
      %s23 = sadd.s32 1, %s19
    $region7: #{tpu_custom_call.1} parent=1 // loop_footer_branch
      %18 = sbr.rel target = $region3
    $region8: #{tpu_custom_call.1} parent=1 // loop_exit
      _
    %1014 = vsyncpa [#allocation4], 1
    %s1015 = scalar_lea.sflag [#allocation4], 1
    %1016 = vsyncpa %s1015, 1
    %1017 = vsyncpa [#allocation6], 1

</llo_original>
